<compile_context>
chip_gen: v5e
topology: v5e:2x2
jax: 0.10.0
libtpu: 0.0.40
codegen_flags: <defaults>
</compile_context>

<pallas_src>
import math
from functools import partial

import jax
import jax.numpy as jnp
from jax.experimental import pallas as pl
from jax.experimental.pallas import tpu as pltpu


def _scaled_max_norm_kernel(x_ref, w_ref, o_ref, *, eps):
    x = x_ref[...]                                                # (tile_rows, hidden)
    xf = x.astype(jnp.float32)                                    # torch: x = x.float()
    denom = jnp.max(jnp.abs(xf), axis=-1, keepdims=True) + eps    # (tile_rows, 1)
    # Exact per-row reciprocal (tile_rows elements) + broadcast multiply on the
    # VPU instead of a full-tile divide; stays well within 1e-5 of torch.
    inv = pl.reciprocal(denom, approx=False)
    normed = (xf * inv).astype(x.dtype)                           # torch: x.to(pdtype)
    w = w_ref[...].astype(jnp.float32)                            # (1, hidden)
    o_ref[...] = (w * normed.astype(jnp.float32)).astype(o_ref.dtype)


def _tpu_generation():
    try:
        kind = jax.devices()[0].device_kind.lower()
    except Exception:
        return None
    if "v5 lite" in kind or "v5e" in kind or "v5litepod" in kind:
        return "v5e"
    if "v6" in kind:
        return "v6e"
    if "v7" in kind or "7x" in kind:
        return "v7x"
    return None


def _vmem_plan(generation):
    """Return (total per-step pipeline footprint budget, vmem_limit_bytes|None)."""
    if generation == "v5e":
        return 14 << 20, None           # fits the 16 MiB scoped default
    if generation == "v6e":
        return 56 << 20, 100 << 20      # 128 MiB physical VMEM; raise scoped limit
    if generation == "v7x":
        return 44 << 20, 56 << 20       # 64 MiB physical VMEM; leave headroom
    return 24 << 20, 48 << 20           # unknown: safe middle ground


def scaled_max_norm(x, weight, eps: float = 1e-12,
                    tile_rows: int | None = None,
                    out_dtype=None):
    """y = weight * (x.float() / (max|x.float()| along last dim + eps)).to(x.dtype).

    `out_dtype` overrides the output dtype (e.g. keep bf16 for bf16 inputs to
    cut HBM write traffic); default matches the PyTorch module exactly
    (promote_types(x.dtype, weight.dtype), i.e. f32 with an f32 weight).
    """
    orig_shape = x.shape
    hidden = orig_shape[-1]
    rows = math.prod(orig_shape[:-1]) if len(orig_shape) > 1 else 1
    x2 = x.reshape(rows, hidden)
    w2 = weight.reshape(1, hidden)

    if out_dtype is None:
        out_dtype = jnp.promote_types(x.dtype, weight.dtype)   # torch semantics

    generation = _tpu_generation()
    footprint_budget, vmem_limit = _vmem_plan(generation)

    in_item = jnp.dtype(x.dtype).itemsize
    out_item = jnp.dtype(out_dtype).itemsize

    if tile_rows is None:
        # Total pipeline footprint per row of tile:
        #   2x double-buffered input + 2x double-buffered output + f32 temporaries.
        bytes_per_row = hidden * (2 * in_item + 2 * out_item + 4)
        tile_rows = max(8, (footprint_budget // bytes_per_row) // 8 * 8)
    if tile_rows >= rows:
        tile_rows = rows                                        # single full block

    if generation == "v7x" and rows > 8:
        # Ensure grid length >= 2 so both TensorCores get work.
        half = -(-rows // 2)
        half = -(-half // 8) * 8
        tile_rows = min(tile_rows, half)

    grid = (pl.cdiv(rows, tile_rows),)                          # partial last block OK

    # Advisory cost hint (abs + max-compare + 2 muls + casts ~= 5 flops/elem).
    cost = pl.CostEstimate(
        flops=5 * rows * hidden,
        transcendentals=0,                                      # exact reciprocal
        bytes_accessed=rows * hidden * (in_item + out_item)
        + hidden * jnp.dtype(weight.dtype).itemsize,
    )

    cp_kwargs = dict(dimension_semantics=("parallel",))
    if vmem_limit is not None:
        cp_kwargs["vmem_limit_bytes"] = vmem_limit

    out = pl.pallas_call(
        partial(_scaled_max_norm_kernel, eps=eps),
        out_shape=jax.ShapeDtypeStruct((rows, hidden), out_dtype),
        grid_spec=pltpu.PrefetchScalarGridSpec(
            num_scalar_prefetch=0,
            grid=grid,
            in_specs=[
                pl.BlockSpec((tile_rows, hidden), lambda i: (i, 0)),
                pl.BlockSpec((1, hidden), lambda i: (0, 0)),    # weight, resident
            ],
            out_specs=pl.BlockSpec((tile_rows, hidden), lambda i: (i, 0)),
        ),
        compiler_params=pltpu.CompilerParams(**cp_kwargs),
        cost_estimate=cost,
    )(x2, w2)

    return out.reshape(orig_shape[:-1] + (hidden,))


def _reference(x, weight, eps=1e-12):
    xf = x.astype(jnp.float32)
    n = xf / (jnp.max(jnp.abs(xf), axis=-1, keepdims=True) + eps)
    out_dtype = jnp.promote_types(x.dtype, weight.dtype)
    return (weight.astype(jnp.float32) * n.astype(x.dtype).astype(jnp.float32)
            ).astype(out_dtype)


if __name__ == "__main__":
    key = jax.random.PRNGKey(0)
    kx, kw = jax.random.split(key)
    batch, seq, hidden = 2, 8, 32
    x = jax.random.normal(kx, (batch, seq, hidden), dtype=jnp.float32)
    # ScaledMaxNorm initializes weight to ones; use a non-trivial weight to
    # actually exercise the scaling path.
    weight = 1.0 + 0.1 * jax.random.normal(kw, (hidden,), dtype=jnp.float32)

    y = scaled_max_norm(x, weight, eps=1e-12)
    y = jax.block_until_ready(y)

    y_ref = _reference(x, weight, eps=1e-12)
    assert y.shape == x.shape, (y.shape, x.shape)
    assert y.dtype == y_ref.dtype, (y.dtype, y_ref.dtype)
    assert jnp.allclose(y, y_ref, atol=1e-5, rtol=1e-5)

    print("KERNEL_OK")
</pallas_src>

<mosaic_0001>
module attributes {stable_mosaic.version = 11 : i64} {
  func.func @_scaled_max_norm_kernel(%arg0: i32, %arg1: memref<16x32xf32, #tpu.memory_space<vmem>>, %arg2: memref<1x32xf32, #tpu.memory_space<vmem>>, %arg3: memref<16x32xf32, #tpu.memory_space<vmem>>) attributes {dimension_semantics = [#tpu.dimension_semantics<parallel>], iteration_bounds = array<i64: 1>, scalar_prefetch = 0 : i64, scratch_operands = 0 : i64, tpu.core_type = #tpu.core_type<tc>, window_params = [{transform_indices = @transform_0, window_bounds = array<i64: 16, 32>}, {pipeline_mode = #tpu.pipeline_mode<synchronous>, transform_indices = @transform_1, window_bounds = array<i64: 1, 32>}, {transform_indices = @transform_2, window_bounds = array<i64: 16, 32>}]} {
    %c0 = arith.constant 0 : index
    %c0_0 = arith.constant 0 : index
    %0 = vector.load %arg1[%c0, %c0_0] : memref<16x32xf32, #tpu.memory_space<vmem>>, vector<16x32xf32>
    %1 = math.absf %0 : vector<16x32xf32>
    %cst = arith.constant dense<0xFF800000> : vector<16xf32>
    %2 = vector.multi_reduction <maximumf>, %1, %cst [1] : vector<16x32xf32> to vector<16xf32>
    %3 = vector.shape_cast %2 : vector<16xf32> to vector<16x1xf32>
    %cst_1 = arith.constant 9.99999996E-13 : f32
    %4 = vector.broadcast %cst_1 : f32 to vector<16x1xf32>
    %5 = arith.addf %3, %4 : vector<16x1xf32>
    %6 = tpu.reciprocal %5 : vector<16x1xf32> -> vector<16x1xf32>
    %7 = vector.broadcast %6 : vector<16x1xf32> to vector<16x32xf32>
    %8 = arith.mulf %0, %7 : vector<16x32xf32>
    %c0_2 = arith.constant 0 : index
    %c0_3 = arith.constant 0 : index
    %9 = vector.load %arg2[%c0_2, %c0_3] : memref<1x32xf32, #tpu.memory_space<vmem>>, vector<1x32xf32>
    %10 = vector.broadcast %9 : vector<1x32xf32> to vector<16x32xf32>
    %11 = arith.mulf %10, %8 : vector<16x32xf32>
    %c0_4 = arith.constant 0 : index
    %c0_5 = arith.constant 0 : index
    %12 = vector.load %arg3[%c0_4, %c0_5] : memref<16x32xf32, #tpu.memory_space<vmem>>, vector<16x32xf32>
    tpu.vector_store %arg3[%c0_4, %c0_5], %11 {strides = array<i32>} : memref<16x32xf32, #tpu.memory_space<vmem>>, vector<16x32xf32>,
    return
  }
  func.func @transform_0(%arg0: i32) -> (i32, i32) {
    %c0_i32 = arith.constant 0 : i32
    %c0_i32_0 = arith.constant 0 : i32
    return %arg0, %c0_i32 : i32, i32
  }
  func.func @transform_1(%arg0: i32) -> (i32, i32) {
    %c0_i32 = arith.constant 0 : i32
    %c0_i32_0 = arith.constant 0 : i32
    %c0_i32_1 = arith.constant 0 : i32
    return %c0_i32, %c0_i32_0 : i32, i32
  }
  func.func @transform_2(%arg0: i32) -> (i32, i32) {
    %c0_i32 = arith.constant 0 : i32
    %c0_i32_0 = arith.constant 0 : i32
    return %arg0, %c0_i32 : i32, i32
  }
}

</mosaic_0001>

<llo_original>
// kernel: tpu_custom_call.1
$region0: #{tpu_custom_call.1}
  #allocation0 [shape = 'u32[]', space=smem, size = 0x4, offset = 0x4, fixed_abs, tag = 'smem constant byte address 0x4 - core index']
  #allocation1 [shape = 'u32[72,128]{1,0:T(1,128)}', space=vmem, size = 0x9000, scoped, tag = 'internal scratch']
  %s0 = inlined_call_operand.hbm [shape: f32[16,32], index: 0, kind: input, shape index: {}]
  %s1 = inlined_call_operand.hbm [shape: f32[1,32], index: 1, kind: input, shape index: {}]
  %s2 = inlined_call_operand.hbm [shape: f32[16,32], index: 2, kind: output, shape index: {}]
  %s3 = sld [smem:[#allocation0]]
  $region26: #{tpu_custom_call.1} parent=0
    _
  %s5 = ssub.s32 1, %s3
  %s6 = scalar_select 0, %s5, %s3
  $region1: #{tpu_custom_call.1} parent=0
    #allocation2 [shape = 'u8[8192]{0}', space=vmem, size = 0x2000, scoped, tag = 'input window, operand 0, single buffered']
    #allocation3 [shape = 's32[1]{0}', space=sflag, size = 0x4, scoped, tag = 'scoped memory for tpu_custom_call.1']
    #allocation4 [shape = 's32[1]{0}', space=sflag, size = 0x4, scoped, tag = 'scoped memory for tpu_custom_call.1']
    #allocation5 [shape = 'u8[512]{0}', space=vmem, size = 0x400, scoped, tag = 'input window, operand 1, single buffered']
    #allocation6 [shape = 's32[1]{0}', space=sflag, size = 0x4, scoped, tag = 'scoped memory for tpu_custom_call.1']
    #allocation7 [shape = 'u8[8192]{0}', space=vmem, size = 0x2000, scoped, tag = 'output window, operand 0, single buffered']
    %7 = vsyncpa [#allocation3], 0
    %8 = vsyncpa [#allocation6], 0
    %9 = vsyncpa [#allocation4], 0
    // Predicated region
    $region2: #{tpu_custom_call.1} parent=1 // pred_check
      _
    $region3: #{tpu_custom_call.1} parent=1 // pred_check_branch
      %11 = sbr.rel (0) target = $region5
    $region4: #{tpu_custom_call.1} parent=1 // pred_region
      %13 = vsyncadd [#allocation3], 0
      %s14 = sshll.u32 %s0, 4
      %s15 = int_to_ptr.hbm [resolvable:$true] %s14
      %s16 = sshll.u32 [#allocation2], 4
      %s17 = int_to_ptr.vmem [resolvable:$true] %s16
      %22 = dma.hbm_to_vmem [thread:$0]  %s15, 256, %s17, [#allocation3], 128, 128, 8
    $region5: #{tpu_custom_call.1} parent=1 // pred_fallthru
      _
    // Predicated region
    $region6: #{tpu_custom_call.1} parent=1 // pred_check
      _
    $region7: #{tpu_custom_call.1} parent=1 // pred_check_branch
      %24 = sbr.rel (0) target = $region9
    $region8: #{tpu_custom_call.1} parent=1 // pred_region
      %26 = vsyncadd [#allocation6], 0
      %s28 = sshll.u32 %s1, 4
      %s29 = int_to_ptr.hbm [resolvable:$true] %s28
      %s30 = sshll.u32 [#allocation5], 4
      %s31 = int_to_ptr.vmem [resolvable:$true] %s30
      %33 = dma.hbm_to_vmem [thread:$0]  %s29, 16, %s31, [#allocation6]
    $region9: #{tpu_custom_call.1} parent=1 // pred_fallthru
      _
    // Predicated region
    $region10: #{tpu_custom_call.1} parent=1 // pred_check
      _
    $region11: #{tpu_custom_call.1} parent=1 // pred_check_branch
      %35 = sbr.rel (0) target = $region13
    $region12: #{tpu_custom_call.1} parent=1 // pred_region
      %37 = dma.done [#allocation3], 256
    $region13: #{tpu_custom_call.1} parent=1 // pred_fallthru
      _
    // Predicated region
    $region14: #{tpu_custom_call.1} parent=1 // pred_check
      _
    $region15: #{tpu_custom_call.1} parent=1 // pred_check_branch
      %39 = sbr.rel (0) target = $region17
    $region16: #{tpu_custom_call.1} parent=1 // pred_region
      %41 = dma.done [#allocation6], 16
    $region17: #{tpu_custom_call.1} parent=1 // pred_fallthru
      _
    %v42 = vld [vmem:[#allocation2] sm:$0xff]
    %v43 = vld [vmem:[#allocation2 + $0x8] sm:$0xff]
    %v44 = vand.u32 2147483647, %v42
    %v45 = vand.u32 2147483647, %v43
    %vm46 = vcmask 261120
    %v47 = vsel %vm46, %v44, -inf
    %48 = vmax.xlane.f32.xlu0 %v47
    %v49 = vpop.xlane.xlu0 %48
    %v50 = vsel %vm46, %v45, -inf
    %51 = vmax.xlane.f32.xlu0 %v50
    %v52 = vpop.xlane.xlu0 %51
    %v53 = vadd.f32 %v49, 1e-12
    %v54 = vadd.f32 %v52, 1e-12
    %v55 = vrcp.pop %v53
    %v56 = vmul.f32 %v53, %v55
    %v57 = vsub.f32 1.0, %v56
    %v58 = vmul.f32 %v55, %v57
    %v59 = vadd.f32 %v55, %v58
    %vm60 = vweird.f32 %v53
    %vm61 = vweird.f32 %v55
    %vm62 = vmor %vm60, %vm61
    %v63 = vsel %vm62, %v55, %v59
    %v64 = vand.u32 2147483647, %v53
    %vm65 = vcmp.eq.f32.partialorder %v64, 8.507059e+37
    %v66 = vand.u32 %v53, 2147483648
    %v67 = vor.u32 1.1754944e-38, %v66
    %v68 = vsel %vm65, %v67, %v63
    %v69 = vrcp.pop %v54
    %v70 = vmul.f32 %v54, %v69
    %v71 = vsub.f32 1.0, %v70
    %v72 = vmul.f32 %v69, %v71
    %v73 = vadd.f32 %v69, %v72
    %vm74 = vweird.f32 %v54
    %vm75 = vweird.f32 %v69
    %vm76 = vmor %vm74, %vm75
    %v77 = vsel %vm76, %v69, %v73
    %v78 = vand.u32 2147483647, %v54
    %vm79 = vcmp.eq.f32.partialorder %v78, 8.507059e+37
    %v80 = vand.u32 %v54, 2147483648
    %v81 = vor.u32 1.1754944e-38, %v80
    %v82 = vsel %vm79, %v81, %v77
    %v83 = vmul.f32 %v42, %v68
    %v84 = vmul.f32 %v43, %v82
    %v85 = vld [vmem:[#allocation5] sm:$0x1]
    %v87 = vperm.slane %v85, 0
    %v89 = vmul.f32 %v87, %v83
    %v90 = vmul.f32 %v87, %v84
    %91 = vst.msk [vmem:[#allocation7] sm:$0xff] %vm46, %v89
    %92 = vst.msk [vmem:[#allocation7 + $0x8] sm:$0xff] %vm46, %v90
    // Predicated region
    $region18: #{tpu_custom_call.1} parent=1 // pred_check
      _
    $region19: #{tpu_custom_call.1} parent=1 // pred_check_branch
      %94 = sbr.rel (0) target = $region21
    $region20: #{tpu_custom_call.1} parent=1 // pred_region
      %96 = vsyncadd [#allocation4], 0
      %s97 = sshll.u32 [#allocation7], 4
      %s98 = int_to_ptr.vmem [resolvable:$true] %s97
      %s99 = sshll.u32 %s2, 4
      %s100 = int_to_ptr.hbm [resolvable:$true] %s99
      %105 = dma.vmem_to_hbm [thread:$0]  %s98, 256, %s100, [#allocation4], 128, 128, 8
    $region21: #{tpu_custom_call.1} parent=1 // pred_fallthru
      _
    // Predicated region
    $region22: #{tpu_custom_call.1} parent=1 // pred_check
      _
    $region23: #{tpu_custom_call.1} parent=1 // pred_check_branch
      %107 = sbr.rel (0) target = $region25
    $region24: #{tpu_custom_call.1} parent=1 // pred_region
      %109 = dma.done [#allocation4], 256
    $region25: #{tpu_custom_call.1} parent=1 // pred_fallthru
      _
    %110 = vsyncpa [#allocation3], 1
    %111 = vsyncpa [#allocation6], 1
    %112 = vsyncpa [#allocation4], 1

</llo_original>
